<compile_context>
chip_gen: v6e
topology: v6e:2x2x1
jax: 0.10.0
libtpu: 0.0.40
codegen_flags: <defaults>
</compile_context>

<pallas_src>
import functools

import jax
import jax.numpy as jnp
from jax.experimental import pallas as pl
from jax.experimental.pallas import tpu as pltpu


def _round_up(x, m):
    return (x + m - 1) // m * m


def _pick_block(B, S, L, target_bytes=1 << 20):
    """Pick a batch tile TB (multiple of 8) giving ~target_bytes feature blocks."""
    per_sample = max(1, S * L * 4)
    max_tb = min(1024, max(8, (target_bytes // per_sample) // 8 * 8))
    n_blocks = -(-B // max_tb)
    return _round_up(-(-B // n_blocks), 8)


def _aidw_kernel(beta, f_ref, aux_ref, wbig_ref, exp_ref, red_ref, b_ref, out_ref):
    """One grid step processes TB samples.

    f_ref:    (TB, S*L) f32  features, stations flattened onto lanes (lane-dense)
    aux_ref:  (2, TB, S) f32 [0] = squared distance to target, [1] = station mask
    wbig_ref: (S*L, S)  f32  block-diagonal linear weight: wbig[s*L+l, s] = w[l]
    exp_ref:  (S, S*L)  f32  0/1 expander: exp[s, s*L+l] = 1
    red_ref:  (S*L, L)  f32  0/1 reducer:  red[s*L+l, l] = 1
    b_ref:    (1, 1)    f32  linear bias (SMEM scalar)
    out_ref:  (TB, L)   f32
    """
    f = f_ref[...]                                    # (TB, S*L)
    d2 = aux_ref[0]                                   # (TB, S)  eps-clamped squared distance
    m = aux_ref[1]                                    # (TB, S)  float mask in {0, 1}

    # --- inverse-distance weights, normalized over the valid stations only ---
    if beta == 2.0:
        raw = pl.reciprocal(d2, approx=True)          # dist**-2 == 1/d2 (single EUP vrcp)
    else:
        raw = jnp.exp((-0.5 * beta) * jnp.log(d2))    # dist**-beta without sqrt+pow chain
    denom = jnp.sum(raw * m, axis=-1, keepdims=True)  # (TB, 1)
    idw = raw * pl.reciprocal(denom, approx=True)     # (TB, S)

    # --- attention scores: linear(L -> 1) per station via one MXU matmul, mask, sigmoid ---
    lin = jnp.dot(f, wbig_ref[...], preferred_element_type=jnp.float32) + b_ref[0, 0]
    sig = jax.nn.sigmoid(lin * m)        # masked stations -> sigmoid(0) = 0.5 (torch semantics)
    logits = sig * idw

    # --- softmax over the valid stations only ---
    valid = m > 0.0
    neg_big = jnp.float32(-1e30)
    masked = jnp.where(valid, logits, neg_big)
    mx = jnp.max(masked, axis=-1, keepdims=True)      # (TB, 1)
    e = jnp.where(valid, jnp.exp(masked - mx), 0.0)
    soft = e * pl.reciprocal(jnp.sum(e, axis=-1, keepdims=True), approx=True)

    # valid stations -> softmax weight; masked stations keep sigmoid(0) = 0.5 (as in torch)
    attn = jnp.where(valid, soft, sig)                # (TB, S)

    # --- expand attn to per-element weights, apply, reduce back over stations (MXU) ---
    attn_exp = jnp.dot(attn, exp_ref[...], preferred_element_type=jnp.float32)  # (TB, S*L)
    weighted = f * attn_exp                                                     # dense VPU
    out_ref[...] = jnp.dot(weighted, red_ref[...], preferred_element_type=jnp.float32)


def aidw_forward(features, src_locs, tar_loc, src_masks, weight, bias, beta):
    """Pallas implementation of AIDWLayer.forward."""
    f32 = jnp.float32
    B, S, L = features.shape

    # Pack the tiny side inputs into one dense stream: squared distance + mask.
    mask_f = src_masks.astype(f32)                                     # (B, S)
    diff = src_locs.astype(f32) - tar_loc.astype(f32)[:, None, :]      # (B, S, 2)
    d2 = jnp.maximum(jnp.sum(diff * diff, axis=-1), 1e-12)             # (B, S), eps-clamped
    aux = jnp.stack([d2, mask_f], axis=0)                              # (2, B, S)

    # Flatten stations onto lanes (free reshape -> lane-dense loads / VMEM tiles).
    feats = features.astype(f32).reshape(B, S * L)

    # Constant matrices so the segmented per-station ops run as plain matmuls.
    w = weight.reshape(L).astype(f32)
    eye_s = jnp.eye(S, dtype=f32)
    wbig = jnp.kron(eye_s, w[:, None])                                 # (S*L, S)
    expand = jnp.kron(eye_s, jnp.ones((1, L), f32))                    # (S, S*L)
    reduce_ = jnp.kron(jnp.ones((S, 1), f32), jnp.eye(L, dtype=f32))   # (S*L, L)
    b = bias.reshape(1, 1).astype(f32)

    # Batch tiling (pad B to a multiple of the tile; padded rows are benign and sliced off).
    TB = _pick_block(B, S, L)
    B_pad = _round_up(B, TB)
    if B_pad != B:
        feats = jnp.pad(feats, ((0, B_pad - B), (0, 0)))
        aux = jnp.pad(aux, ((0, 0), (0, B_pad - B), (0, 0)), constant_values=1.0)

    kernel = functools.partial(_aidw_kernel, float(beta))
    out = pl.pallas_call(
        kernel,
        out_shape=jax.ShapeDtypeStruct((B_pad, L), f32),
        grid=(B_pad // TB,),
        in_specs=[
            pl.BlockSpec((TB, S * L), lambda i: (i, 0)),               # features (flat)
            pl.BlockSpec((2, TB, S), lambda i: (0, i, 0)),             # packed d2 + mask
            pl.BlockSpec((S * L, S), lambda i: (0, 0)),                # block-diag weight
            pl.BlockSpec((S, S * L), lambda i: (0, 0)),                # expander
            pl.BlockSpec((S * L, L), lambda i: (0, 0)),                # reducer
            pl.BlockSpec(memory_space=pltpu.MemorySpace.SMEM),         # bias scalar
        ],
        out_specs=pl.BlockSpec((TB, L), lambda i: (i, 0)),
        compiler_params=pltpu.CompilerParams(dimension_semantics=("parallel",)),
    )(feats, aux, wbig, expand, reduce_, b)

    return out[:B].astype(features.dtype)


def aidw_reference(features, src_locs, tar_loc, src_masks, weight, bias, beta):
    """Pure-JAX reference mirroring the PyTorch loop semantics."""
    B, S, L = features.shape
    outs = []
    for i in range(B):
        m = src_masks[i].astype(jnp.float32)[:, None]                       # (S, 1)
        diff = src_locs[i] - tar_loc[i][None, :]
        dist = jnp.sqrt(jnp.sum(diff * diff, axis=-1, keepdims=True))       # (S, 1)
        raw = dist ** (-beta)
        idw = raw / jnp.sum(raw * m)
        lin = features[i] @ weight.reshape(L, 1) + bias.reshape(1, 1)       # (S, 1)
        sig = jax.nn.sigmoid(lin * m)
        logits = jnp.where(m > 0, sig * idw, -jnp.inf)
        e = jnp.where(m > 0, jnp.exp(logits - jnp.max(logits)), 0.0)
        soft = e / jnp.sum(e)
        attn = jnp.where(m > 0, soft, sig)
        outs.append(jnp.sum(attn * features[i], axis=0))
    return jnp.stack(outs)


if __name__ == "__main__":
    config = {"n_stations": 8, "output_size": 32, "idw_beta": 2.0}
    B, S, L = 3, config["n_stations"], config["output_size"]

    key = jax.random.PRNGKey(0)
    k1, k2, k3, k4, k5 = jax.random.split(key, 5)
    features = jax.random.normal(k1, (B, S, L), jnp.float32)
    src_locs = jax.random.uniform(k2, (B, S, 2), jnp.float32, minval=0.0, maxval=10.0)
    tar_loc = jax.random.uniform(k3, (B, 2), jnp.float32, minval=0.0, maxval=10.0)
    src_masks = jnp.array(
        [[1, 1, 1, 1, 1, 0, 0, 0],
         [1, 1, 0, 1, 1, 1, 1, 0],
         [0, 1, 1, 0, 1, 0, 1, 1]], dtype=bool)

    # deterministic nn.Linear(seq_len, 1) parameters (xavier-uniform-style bound)
    bound = (6.0 / (L + 1)) ** 0.5
    weight = jax.random.uniform(k4, (1, L), jnp.float32, minval=-bound, maxval=bound)
    bias = jax.random.uniform(k5, (1,), jnp.float32, minval=-0.1, maxval=0.1)

    out = aidw_forward(features, src_locs, tar_loc, src_masks, weight, bias,
                       config["idw_beta"])
    out = jax.block_until_ready(out)

    ref = aidw_reference(features, src_locs, tar_loc, src_masks, weight, bias,
                         config["idw_beta"])

    assert out.shape == (B, L), out.shape
    # Tolerance accounts for the approx EUP reciprocals and MXU f32 pass rounding.
    assert jnp.allclose(out, ref, atol=2e-2, rtol=2e-2), float(jnp.max(jnp.abs(out - ref)))
    print("KERNEL_OK")
</pallas_src>

<mosaic_0001>
module attributes {stable_mosaic.version = 11 : i64} {
  func.func @_aidw_kernel(%arg0: i32, %arg1: memref<8x256xf32, #tpu.memory_space<vmem>>, %arg2: memref<2x8x8xf32, #tpu.memory_space<vmem>>, %arg3: memref<256x8xf32, #tpu.memory_space<vmem>>, %arg4: memref<8x256xf32, #tpu.memory_space<vmem>>, %arg5: memref<256x32xf32, #tpu.memory_space<vmem>>, %arg6: memref<1x1xf32, #tpu.memory_space<smem>>, %arg7: memref<8x32xf32, #tpu.memory_space<vmem>>) attributes {dimension_semantics = [#tpu.dimension_semantics<parallel>], iteration_bounds = array<i64: 1>, scalar_prefetch = 0 : i64, scratch_operands = 0 : i64, tpu.core_type = #tpu.core_type<tc>, window_params = [{transform_indices = @transform_0, window_bounds = array<i64: 8, 256>}, {transform_indices = @transform_1, window_bounds = array<i64: 2, 8, 8>}, {pipeline_mode = #tpu.pipeline_mode<synchronous>, transform_indices = @transform_2, window_bounds = array<i64: 256, 8>}, {pipeline_mode = #tpu.pipeline_mode<synchronous>, transform_indices = @transform_3, window_bounds = array<i64: 8, 256>}, {pipeline_mode = #tpu.pipeline_mode<synchronous>, transform_indices = @transform_4, window_bounds = array<i64: 256, 32>}, {transform_indices = @transform_5, window_bounds = array<i64: 1, 1>}, {transform_indices = @transform_6, window_bounds = array<i64: 8, 32>}]} {
    %c0 = arith.constant 0 : index
    %c0_0 = arith.constant 0 : index
    %0 = vector.load %arg1[%c0, %c0_0] : memref<8x256xf32, #tpu.memory_space<vmem>>, vector<8x256xf32>
    %c0_1 = arith.constant 0 : index
    %c0_2 = arith.constant 0 : index
    %c0_3 = arith.constant 0 : index
    %1 = vector.load %arg2[%c0_1, %c0_2, %c0_3] : memref<2x8x8xf32, #tpu.memory_space<vmem>>, vector<1x8x8xf32>
    %2 = vector.shape_cast %1 : vector<1x8x8xf32> to vector<8x8xf32>
    %c1 = arith.constant 1 : index
    %c0_4 = arith.constant 0 : index
    %c0_5 = arith.constant 0 : index
    %3 = vector.load %arg2[%c1, %c0_4, %c0_5] : memref<2x8x8xf32, #tpu.memory_space<vmem>>, vector<1x8x8xf32>
    %4 = vector.shape_cast %3 : vector<1x8x8xf32> to vector<8x8xf32>
    %5 = tpu.reciprocal %2 {approx = true} : vector<8x8xf32> -> vector<8x8xf32>
    %6 = arith.mulf %5, %4 : vector<8x8xf32>
    %cst = arith.constant dense<0.000000e+00> : vector<8xf32>
    %7 = vector.multi_reduction <add>, %6, %cst [1] : vector<8x8xf32> to vector<8xf32>
    %8 = vector.shape_cast %7 : vector<8xf32> to vector<8x1xf32>
    %9 = tpu.reciprocal %8 {approx = true} : vector<8x1xf32> -> vector<8x1xf32>
    %10 = vector.broadcast %9 : vector<8x1xf32> to vector<8x8xf32>
    %11 = arith.mulf %5, %10 : vector<8x8xf32>
    %c0_6 = arith.constant 0 : index
    %c0_7 = arith.constant 0 : index
    %12 = vector.load %arg3[%c0_6, %c0_7] : memref<256x8xf32, #tpu.memory_space<vmem>>, vector<256x8xf32>
    %cst_8 = arith.constant dense<0.000000e+00> : vector<8x8xf32>
    %13 = tpu.matmul %0, %12, %cst_8 {dimension_numbers = #tpu.dot_dimension_numbers<[1], [0], [0], [1], [0, 0, 1, 1], [], []>} : vector<8x256xf32>, vector<256x8xf32>, vector<8x8xf32> -> vector<8x8xf32>
    %c0_9 = arith.constant 0 : index
    %c0_10 = arith.constant 0 : index
    %14 = memref.load %arg6[%c0_9, %c0_10] : memref<1x1xf32, #tpu.memory_space<smem>>
    %15 = vector.broadcast %14 : f32 to vector<8x8xf32>
    %16 = arith.addf %13, %15 : vector<8x8xf32>
    %17 = arith.mulf %16, %4 : vector<8x8xf32>
    %18 = arith.negf %17 : vector<8x8xf32>
    %19 = math.exp %18 : vector<8x8xf32>
    %cst_11 = arith.constant 1.000000e+00 : f32
    %20 = vector.broadcast %cst_11 : f32 to vector<8x8xf32>
    %21 = arith.addf %20, %19 : vector<8x8xf32>
    %22 = arith.divf %20, %21 : vector<8x8xf32>
    %23 = arith.mulf %22, %11 : vector<8x8xf32>
    %cst_12 = arith.constant 0.000000e+00 : f32
    %24 = vector.broadcast %cst_12 : f32 to vector<8x8xf32>
    %25 = arith.cmpf ogt, %4, %24 : vector<8x8xf32>
    %cst_13 = arith.constant -1.000000e+30 : f32
    %26 = vector.broadcast %cst_13 : f32 to vector<8x8xf32>
    %27 = arith.select %25, %23, %26 : vector<8x8xi1>, vector<8x8xf32>
    %cst_14 = arith.constant dense<0xFF800000> : vector<8xf32>
    %28 = vector.multi_reduction <maximumf>, %27, %cst_14 [1] : vector<8x8xf32> to vector<8xf32>
    %29 = vector.shape_cast %28 : vector<8xf32> to vector<8x1xf32>
    %30 = vector.broadcast %29 : vector<8x1xf32> to vector<8x8xf32>
    %31 = arith.subf %27, %30 : vector<8x8xf32>
    %32 = math.exp %31 : vector<8x8xf32>
    %cst_15 = arith.constant 0.000000e+00 : f32
    %33 = vector.broadcast %cst_15 : f32 to vector<8x8xf32>
    %34 = arith.select %25, %32, %33 : vector<8x8xi1>, vector<8x8xf32>
    %cst_16 = arith.constant dense<0.000000e+00> : vector<8xf32>
    %35 = vector.multi_reduction <add>, %34, %cst_16 [1] : vector<8x8xf32> to vector<8xf32>
    %36 = vector.shape_cast %35 : vector<8xf32> to vector<8x1xf32>
    %37 = tpu.reciprocal %36 {approx = true} : vector<8x1xf32> -> vector<8x1xf32>
    %38 = vector.broadcast %37 : vector<8x1xf32> to vector<8x8xf32>
    %39 = arith.mulf %34, %38 : vector<8x8xf32>
    %40 = arith.select %25, %39, %22 : vector<8x8xi1>, vector<8x8xf32>
    %c0_17 = arith.constant 0 : index
    %c0_18 = arith.constant 0 : index
    %41 = vector.load %arg4[%c0_17, %c0_18] : memref<8x256xf32, #tpu.memory_space<vmem>>, vector<8x256xf32>
    %cst_19 = arith.constant dense<0.000000e+00> : vector<8x256xf32>
    %42 = tpu.matmul %40, %41, %cst_19 {dimension_numbers = #tpu.dot_dimension_numbers<[1], [0], [0], [1], [0, 0, 1, 1], [], []>} : vector<8x8xf32>, vector<8x256xf32>, vector<8x256xf32> -> vector<8x256xf32>
    %43 = arith.mulf %0, %42 : vector<8x256xf32>
    %c0_20 = arith.constant 0 : index
    %c0_21 = arith.constant 0 : index
    %44 = vector.load %arg5[%c0_20, %c0_21] : memref<256x32xf32, #tpu.memory_space<vmem>>, vector<256x32xf32>
    %cst_22 = arith.constant dense<0.000000e+00> : vector<8x32xf32>
    %45 = tpu.matmul %43, %44, %cst_22 {dimension_numbers = #tpu.dot_dimension_numbers<[1], [0], [0], [1], [0, 0, 1, 1], [], []>} : vector<8x256xf32>, vector<256x32xf32>, vector<8x32xf32> -> vector<8x32xf32>
    %c0_23 = arith.constant 0 : index
    %c0_24 = arith.constant 0 : index
    %46 = vector.load %arg7[%c0_23, %c0_24] : memref<8x32xf32, #tpu.memory_space<vmem>>, vector<8x32xf32>
    tpu.vector_store %arg7[%c0_23, %c0_24], %45 {strides = array<i32>} : memref<8x32xf32, #tpu.memory_space<vmem>>, vector<8x32xf32>,
    return
  }
  func.func @transform_0(%arg0: i32) -> (i32, i32) {
    %c0_i32 = arith.constant 0 : i32
    %c0_i32_0 = arith.constant 0 : i32
    return %arg0, %c0_i32 : i32, i32
  }
  func.func @transform_1(%arg0: i32) -> (i32, i32, i32) {
    %c0_i32 = arith.constant 0 : i32
    %c0_i32_0 = arith.constant 0 : i32
    %c0_i32_1 = arith.constant 0 : i32
    return %c0_i32, %arg0, %c0_i32_0 : i32, i32, i32
  }
  func.func @transform_2(%arg0: i32) -> (i32, i32) {
    %c0_i32 = arith.constant 0 : i32
    %c0_i32_0 = arith.constant 0 : i32
    %c0_i32_1 = arith.constant 0 : i32
    return %c0_i32, %c0_i32_0 : i32, i32
  }
  func.func @transform_3(%arg0: i32) -> (i32, i32) {
    %c0_i32 = arith.constant 0 : i32
    %c0_i32_0 = arith.constant 0 : i32
    %c0_i32_1 = arith.constant 0 : i32
    return %c0_i32, %c0_i32_0 : i32, i32
  }
  func.func @transform_4(%arg0: i32) -> (i32, i32) {
    %c0_i32 = arith.constant 0 : i32
    %c0_i32_0 = arith.constant 0 : i32
    %c0_i32_1 = arith.constant 0 : i32
    return %c0_i32, %c0_i32_0 : i32, i32
  }
  func.func @transform_5(%arg0: i32) -> (i32, i32) {
    %c0_i32 = arith.constant 0 : i32
    %c0_i32_0 = arith.constant 0 : i32
    %c0_i32_1 = arith.constant 0 : i32
    return %c0_i32, %c0_i32_0 : i32, i32
  }
  func.func @transform_6(%arg0: i32) -> (i32, i32) {
    %c0_i32 = arith.constant 0 : i32
    %c0_i32_0 = arith.constant 0 : i32
    return %arg0, %c0_i32 : i32, i32
  }
}

</mosaic_0001>

<llo_original>
// kernel: tpu_custom_call.1
$region0: #{tpu_custom_call.1}
  #allocation0 [shape = 'u32[]', space=smem, size = 0x4, offset = 0x4, fixed_abs, tag = 'smem constant byte address 0x4 - core index']
  #allocation1 [shape = 'u32[144,128]{1,0:T(1,128)}', space=vmem, size = 0x12000, scoped, tag = 'internal scratch']
  #allocation2 [shape = 'f32[1,1]{1,0:T(1,128)S(6)}', space=smem, size = 0x200, scoped, tag = 'scoped memory for tpu_custom_call.1']
  %s0 = inlined_call_operand.vmem [shape: f32[8,256], index: 0, kind: input, shape index: {}]
  %s1 = inlined_call_operand.vmem [shape: f32[2,8,8], index: 1, kind: input, shape index: {}]
  %s2 = inlined_call_operand.vmem [shape: f32[256,8], index: 2, kind: input, shape index: {}]
  %s3 = inlined_call_operand.vmem [shape: f32[8,256], index: 3, kind: input, shape index: {}]
  %s4 = inlined_call_operand.vmem [shape: f32[256,32], index: 4, kind: input, shape index: {}]
  %s5 = inlined_call_operand.<no memory space> [shape: f32[1,1], index: 5, kind: input, shape index: {}]
  %s6 = inlined_call_operand.hbm [shape: f32[8,32], index: 6, kind: output, shape index: {}]
  %s7 = sld [smem:[#allocation0]]
  $region34: #{tpu_custom_call.1} parent=0
    _
  %s9 = ssub.s32 1, %s7
  %s10 = scalar_select 0, %s9, %s7
  %11 = sst [smem:[#allocation2]] %s5
  $region1: #{tpu_custom_call.1} parent=0
    #allocation3 [shape = 'u8[4096]{0}', space=vmem, size = 0x1000, scoped, tag = 'output window, operand 0, single buffered']
    #allocation4 [shape = 's32[1]{0}', space=sflag, size = 0x4, scoped, tag = 'scoped memory for tpu_custom_call.1']
    %12 = vsyncpa [#allocation4], 0
    // Predicated region
    $region2: #{tpu_custom_call.1} parent=1 // pred_check
      _
    $region3: #{tpu_custom_call.1} parent=1 // pred_check_branch
      %14 = sbr.rel (0) target = $region5
    $region4: #{tpu_custom_call.1} parent=1 // pred_region
      _
    $region5: #{tpu_custom_call.1} parent=1 // pred_fallthru
      _
    // Predicated region
    $region6: #{tpu_custom_call.1} parent=1 // pred_check
      _
    $region7: #{tpu_custom_call.1} parent=1 // pred_check_branch
      %16 = sbr.rel (0) target = $region9
    $region8: #{tpu_custom_call.1} parent=1 // pred_region
      _
    $region9: #{tpu_custom_call.1} parent=1 // pred_fallthru
      _
    // Predicated region
    $region10: #{tpu_custom_call.1} parent=1 // pred_check
      _
    $region11: #{tpu_custom_call.1} parent=1 // pred_check_branch
      %18 = sbr.rel (0) target = $region13
    $region12: #{tpu_custom_call.1} parent=1 // pred_region
      _
    $region13: #{tpu_custom_call.1} parent=1 // pred_fallthru
      _
    // Predicated region
    $region14: #{tpu_custom_call.1} parent=1 // pred_check
      _
    $region15: #{tpu_custom_call.1} parent=1 // pred_check_branch
      %20 = sbr.rel (0) target = $region17
    $region16: #{tpu_custom_call.1} parent=1 // pred_region
      _
    $region17: #{tpu_custom_call.1} parent=1 // pred_fallthru
      _
    // Predicated region
    $region18: #{tpu_custom_call.1} parent=1 // pred_check
      _
    $region19: #{tpu_custom_call.1} parent=1 // pred_check_branch
      %22 = sbr.rel (0) target = $region21
    $region20: #{tpu_custom_call.1} parent=1 // pred_region
      _
    $region21: #{tpu_custom_call.1} parent=1 // pred_fallthru
      _
    // Predicated region
    $region22: #{tpu_custom_call.1} parent=1 // pred_check
      _
    $region23: #{tpu_custom_call.1} parent=1 // pred_check_branch
      %24 = sbr.rel (0) target = $region25
    $region24: #{tpu_custom_call.1} parent=1 // pred_region
      _
    $region25: #{tpu_custom_call.1} parent=1 // pred_fallthru
      _
    %v25 = vld [vmem:[%s0] sm:$0xff]
    %v26 = vld [vmem:[%s0 + $0x8] sm:$0xff]
    %v27 = vld [vmem:[%s1] sm:$0xff]
    %s28 = scalar_lea.vmem %s1, 8
    %v29 = vld [vmem:[%s28] sm:$0xff]
    %v30 = vrcp.pop %v27
    %v31 = vmul.f32 %v30, %v29
    %vm32 = vcmask 64512
    %v33 = vsel %vm32, %v31, 0.0
    %34 = vadd.xlane.f32.xlu0 %v33
    %v35 = vpop.xlane.xlu0 %34
    %v36 = vrcp.pop %v35
    %v37 = vmul.f32 %v30, %v36
    %v38 = vld [vmem:[%s2] sm:$0xff]
    %v39 = vld [vmem:[%s2 + $0x8] sm:$0xff]
    %v40 = vld [vmem:[%s2 + $0x10] sm:$0xff]
    %v41 = vld [vmem:[%s2 + $0x18] sm:$0xff]
    %v42 = vld [vmem:[%s2 + $0x20] sm:$0xff]
    %v43 = vld [vmem:[%s2 + $0x28] sm:$0xff]
    %v44 = vld [vmem:[%s2 + $0x30] sm:$0xff]
    %v45 = vld [vmem:[%s2 + $0x38] sm:$0xff]
    %v46 = vld [vmem:[%s2 + $0x40] sm:$0xff]
    %v47 = vld [vmem:[%s2 + $0x48] sm:$0xff]
    %v48 = vld [vmem:[%s2 + $0x50] sm:$0xff]
    %v49 = vld [vmem:[%s2 + $0x58] sm:$0xff]
    %v50 = vld [vmem:[%s2 + $0x60] sm:$0xff]
    %v51 = vld [vmem:[%s2 + $0x68] sm:$0xff]
    %v52 = vld [vmem:[%s2 + $0x70] sm:$0xff]
    %v53 = vld [vmem:[%s2 + $0x78] sm:$0xff]
    %v54 = vld [vmem:[%s2 + $0x80] sm:$0xff]
    %v55 = vld [vmem:[%s2 + $0x88] sm:$0xff]
    %v56 = vld [vmem:[%s2 + $0x90] sm:$0xff]
    %v57 = vld [vmem:[%s2 + $0x98] sm:$0xff]
    %v58 = vld [vmem:[%s2 + $0xa0] sm:$0xff]
    %v59 = vld [vmem:[%s2 + $0xa8] sm:$0xff]
    %v60 = vld [vmem:[%s2 + $0xb0] sm:$0xff]
    %v61 = vld [vmem:[%s2 + $0xb8] sm:$0xff]
    %v62 = vld [vmem:[%s2 + $0xc0] sm:$0xff]
    %v63 = vld [vmem:[%s2 + $0xc8] sm:$0xff]
    %v64 = vld [vmem:[%s2 + $0xd0] sm:$0xff]
    %v65 = vld [vmem:[%s2 + $0xd8] sm:$0xff]
    %v66 = vld [vmem:[%s2 + $0xe0] sm:$0xff]
    %v67 = vld [vmem:[%s2 + $0xe8] sm:$0xff]
    %v68 = vld [vmem:[%s2 + $0xf0] sm:$0xff]
    %v69 = vld [vmem:[%s2 + $0xf8] sm:$0xff]
    %s70 = sld [smem:[#allocation2]]
    %v71 = vstv %s70
    %72 = vmatprep.subr.mxu0 0.0
    %73 = vmatpush1.msra.mxu0 %v53
    %74 = vmatprep.subr.mxu0 0.0
    %75 = vmatpush1.msra.mxu0 %v52
    %76 = vmatprep.subr.mxu0 0.0
    %77 = vmatpush1.msra.mxu0 %v51
    %78 = vmatprep.subr.mxu0 0.0
    %79 = vmatpush1.msra.mxu0 %v50
    %80 = vmatprep.subr.mxu0 0.0
    %81 = vmatpush1.msra.mxu0 %v49
    %82 = vmatprep.subr.mxu0 0.0
    %83 = vmatpush1.msra.mxu0 %v48
    %84 = vmatprep.subr.mxu0 0.0
    %85 = vmatpush1.msra.mxu0 %v47
    %86 = vmatprep.subr.mxu0 0.0
    %87 = vmatpush1.msra.mxu0 %v46
    %88 = vmatprep.subr.mxu0 0.0
    %89 = vmatpush1.msra.mxu0 %v45
    %90 = vmatprep.subr.mxu0 0.0
    %91 = vmatpush1.msra.mxu0 %v44
    %92 = vmatprep.subr.mxu0 0.0
    %93 = vmatpush1.msra.mxu0 %v43
    %94 = vmatprep.subr.mxu0 0.0
    %95 = vmatpush1.msra.mxu0 %v42
    %96 = vmatprep.subr.mxu0 0.0
    %97 = vmatpush1.msra.mxu0 %v41
    %98 = vmatprep.subr.mxu0 0.0
    %99 = vmatpush1.msra.mxu0 %v40
    %100 = vmatprep.subr.mxu0 0.0
    %101 = vmatpush1.msra.mxu0 %v39
    %102 = vmatprep.subr.mxu0 0.0
    %103 = vmatpush1.msra.mxu0 %v38
    %104 = vmatprep.subr.mxu0 0.0
    %105 = vmatpush2.msra.mxu0 %v69
    %106 = vmatprep.subr.mxu0 0.0
    %107 = vmatpush2.msra.mxu0 %v68
    %108 = vmatprep.subr.mxu0 0.0
    %109 = vmatpush2.msra.mxu0 %v67
    %110 = vmatprep.subr.mxu0 0.0
    %111 = vmatpush2.msra.mxu0 %v66
    %112 = vmatprep.subr.mxu0 0.0
    %113 = vmatpush2.msra.mxu0 %v65
    %114 = vmatprep.subr.mxu0 0.0
    %115 = vmatpush2.msra.mxu0 %v64
    %116 = vmatprep.subr.mxu0 0.0
    %117 = vmatpush2.msra.mxu0 %v63
    %118 = vmatprep.subr.mxu0 0.0
    %119 = vmatpush2.msra.mxu0 %v62
    %120 = vmatprep.subr.mxu0 0.0
    %121 = vmatpush2.msra.mxu0 %v61
    %122 = vmatprep.subr.mxu0 0.0
    %123 = vmatpush2.msra.mxu0 %v60
    %124 = vmatprep.subr.mxu0 0.0
    %125 = vmatpush2.msra.mxu0 %v59
    %126 = vmatprep.subr.mxu0 0.0
    %127 = vmatpush2.msra.mxu0 %v58
    %128 = vmatprep.subr.mxu0 0.0
    %129 = vmatpush2.msra.mxu0 %v57
    %130 = vmatprep.subr.mxu0 0.0
    %131 = vmatpush2.msra.mxu0 %v56
    %132 = vmatprep.subr.mxu0 0.0
    %133 = vmatpush2.msra.mxu0 %v55
    %134 = vmatprep.subr.mxu0 0.0
    %135 = vmatpush2.msra.mxu0 %v54
    %136 = vmatprep.mubr.f32.mxu0 %v26
    %137 = vmatmul.mubr.f32.gmra.mxu0 %v25
    %v138 = vpop.f32.mrf.mxu0
    %v139 = vadd.f32 %v71, %v138
    %v140 = vpop.f32.mrf.mxu0
    %141 = vdwg.mxu0
    %v142 = vmul.f32 %v139, %v29
    %v143 = vxor.u32 %v142, 2147483648
    %v144 = vmul.f32 %v143, 1.442695
    %v145 = vpow.pop %v144
    %v146 = vadd.f32 %v145, 1.0
    %v147 = vrcp.pop %v146
    %v148 = vmul.f32 1.0, %v147
    %v149 = vmul.f32 %v148, %v37
    %vm150 = vcmp.gt.f32.partialorder %v29, 0.0
    %v151 = vsel %vm150, %v149, -1e+30
    %v152 = vsel %vm32, %v151, -inf
    %153 = vmax.xlane.f32.xlu0 %v152
    %v154 = vpop.xlane.xlu0 %153
    %v155 = vsub.f32 %v151, %v154
    %v156 = vmul.f32 %v155, 1.442695
    %v157 = vpow.pop %v156
    %v158 = vsel %vm150, %v157, 0.0
    %v159 = vsel %vm32, %v158, 0.0
    %160 = vadd.xlane.f32.xlu0 %v159
    %v161 = vpop.xlane.xlu0 %160
    %v162 = vrcp.pop %v161
    %v163 = vmul.f32 %v158, %v162
    %v164 = vsel %vm150, %v163, %v148
    %v165 = vld [vmem:[%s3] sm:$0xff]
    %v166 = vld [vmem:[%s3 + $0x8] sm:$0xff]
    %v168 = vsel %vm32, %v164, 0
    %170 = vmatprep.subr.mxu0 0.0
    %171 = vmatpush1.msra.mxu0 0.0
    %172 = vmatprep.subr.mxu0 0.0
    %173 = vmatpush1.msra.mxu0 0.0
    %174 = vmatprep.subr.mxu0 0.0
    %175 = vmatpush1.msra.mxu0 0.0
    %176 = vmatprep.subr.mxu0 0.0
    %177 = vmatpush1.msra.mxu0 0.0
    %178 = vmatprep.subr.mxu0 0.0
    %179 = vmatpush1.msra.mxu0 0.0
    %180 = vmatprep.subr.mxu0 0.0
    %181 = vmatpush1.msra.mxu0 0.0
    %182 = vmatprep.subr.mxu0 0.0
    %183 = vmatpush1.msra.mxu0 0.0
    %184 = vmatprep.subr.mxu0 0.0
    %185 = vmatpush1.msra.mxu0 0.0
    %186 = vmatprep.subr.mxu0 0.0
    %187 = vmatpush1.msra.mxu0 0.0
    %188 = vmatprep.subr.mxu0 0.0
    %189 = vmatpush1.msra.mxu0 0.0
    %190 = vmatprep.subr.mxu0 0.0
    %191 = vmatpush1.msra.mxu0 0.0
    %192 = vmatprep.subr.mxu0 0.0
    %193 = vmatpush1.msra.mxu0 0.0
    %194 = vmatprep.subr.mxu0 0.0
    %195 = vmatpush1.msra.mxu0 0.0
    %196 = vmatprep.subr.mxu0 0.0
    %197 = vmatpush1.msra.mxu0 0.0
    %198 = vmatprep.subr.mxu0 0.0
    %199 = vmatpush1.msra.mxu0 0.0
    %200 = vmatprep.subr.mxu0 %v166
    %201 = vmatpush1.msra.mxu0 %v165
    %202 = vmatprep.subr.mxu0 0.0
    %203 = vmatpush2.msra.mxu0 0.0
    %204 = vmatprep.subr.mxu0 0.0
    %205 = vmatpush2.msra.mxu0 0.0
    %206 = vmatprep.subr.mxu0 0.0
    %207 = vmatpush2.msra.mxu0 0.0
    %208 = vmatprep.subr.mxu0 0.0
    %209 = vmatpush2.msra.mxu0 0.0
    %210 = vmatprep.subr.mxu0 0.0
    %211 = vmatpush2.msra.mxu0 0.0
    %212 = vmatprep.subr.mxu0 0.0
    %213 = vmatpush2.msra.mxu0 0.0
    %214 = vmatprep.subr.mxu0 0.0
    %215 = vmatpush2.msra.mxu0 0.0
    %216 = vmatprep.subr.mxu0 0.0
    %217 = vmatpush2.msra.mxu0 0.0
    %218 = vmatprep.subr.mxu0 0.0
    %219 = vmatpush2.msra.mxu0 0.0
    %220 = vmatprep.subr.mxu0 0.0
    %221 = vmatpush2.msra.mxu0 0.0
    %222 = vmatprep.subr.mxu0 0.0
    %223 = vmatpush2.msra.mxu0 0.0
    %224 = vmatprep.subr.mxu0 0.0
    %225 = vmatpush2.msra.mxu0 0.0
    %226 = vmatprep.subr.mxu0 0.0
    %227 = vmatpush2.msra.mxu0 0.0
    %228 = vmatprep.subr.mxu0 0.0
    %229 = vmatpush2.msra.mxu0 0.0
    %230 = vmatprep.subr.mxu0 0.0
    %231 = vmatpush2.msra.mxu0 0.0
    %232 = vmatprep.subr.mxu0 0.0
    %233 = vmatpush2.msra.mxu0 0.0
    %234 = vmatprep.mubr.f32.mxu0 0.0
    %235 = vmatmul.mubr.f32.gmra.mxu0 %v168
    %v236 = vpop.f32.mrf.mxu0
    %v237 = vadd.f32 0.0, %v236
    %v238 = vpop.f32.mrf.mxu0
    %v239 = vadd.f32 0.0, %v238
    %240 = vdwg.mxu0
    %v241 = vmul.f32 %v25, %v237
    %v242 = vmul.f32 %v26, %v239
    %v243 = vld [vmem:[%s4] sm:$0xff]
    %v244 = vld [vmem:[%s4 + $0x8] sm:$0xff]
    %v245 = vld [vmem:[%s4 + $0x10] sm:$0xff]
    %v246 = vld [vmem:[%s4 + $0x18] sm:$0xff]
    %v247 = vld [vmem:[%s4 + $0x20] sm:$0xff]
    %v248 = vld [vmem:[%s4 + $0x28] sm:$0xff]
    %v249 = vld [vmem:[%s4 + $0x30] sm:$0xff]
    %v250 = vld [vmem:[%s4 + $0x38] sm:$0xff]
    %v251 = vld [vmem:[%s4 + $0x40] sm:$0xff]
    %v252 = vld [vmem:[%s4 + $0x48] sm:$0xff]
    %v253 = vld [vmem:[%s4 + $0x50] sm:$0xff]
    %v254 = vld [vmem:[%s4 + $0x58] sm:$0xff]
    %v255 = vld [vmem:[%s4 + $0x60] sm:$0xff]
    %v256 = vld [vmem:[%s4 + $0x68] sm:$0xff]
    %v257 = vld [vmem:[%s4 + $0x70] sm:$0xff]
    %v258 = vld [vmem:[%s4 + $0x78] sm:$0xff]
    %v259 = vld [vmem:[%s4 + $0x80] sm:$0xff]
    %v260 = vld [vmem:[%s4 + $0x88] sm:$0xff]
    %v261 = vld [vmem:[%s4 + $0x90] sm:$0xff]
    %v262 = vld [vmem:[%s4 + $0x98] sm:$0xff]
    %v263 = vld [vmem:[%s4 + $0xa0] sm:$0xff]
    %v264 = vld [vmem:[%s4 + $0xa8] sm:$0xff]
    %v265 = vld [vmem:[%s4 + $0xb0] sm:$0xff]
    %v266 = vld [vmem:[%s4 + $0xb8] sm:$0xff]
    %v267 = vld [vmem:[%s4 + $0xc0] sm:$0xff]
    %v268 = vld [vmem:[%s4 + $0xc8] sm:$0xff]
    %v269 = vld [vmem:[%s4 + $0xd0] sm:$0xff]
    %v270 = vld [vmem:[%s4 + $0xd8] sm:$0xff]
    %v271 = vld [vmem:[%s4 + $0xe0] sm:$0xff]
    %v272 = vld [vmem:[%s4 + $0xe8] sm:$0xff]
    %v273 = vld [vmem:[%s4 + $0xf0] sm:$0xff]
    %v274 = vld [vmem:[%s4 + $0xf8] sm:$0xff]
    %275 = vmatprep.subr.mxu0 0.0
    %276 = vmatpush1.msra.mxu0 %v258
    %277 = vmatprep.subr.mxu0 0.0
    %278 = vmatpush1.msra.mxu0 %v257
    %279 = vmatprep.subr.mxu0 0.0
    %280 = vmatpush1.msra.mxu0 %v256
    %281 = vmatprep.subr.mxu0 0.0
    %282 = vmatpush1.msra.mxu0 %v255
    %283 = vmatprep.subr.mxu0 0.0
    %284 = vmatpush1.msra.mxu0 %v254
    %285 = vmatprep.subr.mxu0 0.0
    %286 = vmatpush1.msra.mxu0 %v253
    %287 = vmatprep.subr.mxu0 0.0
    %288 = vmatpush1.msra.mxu0 %v252
    %289 = vmatprep.subr.mxu0 0.0
    %290 = vmatpush1.msra.mxu0 %v251
    %291 = vmatprep.subr.mxu0 0.0
    %292 = vmatpush1.msra.mxu0 %v250
    %293 = vmatprep.subr.mxu0 0.0
    %294 = vmatpush1.msra.mxu0 %v249
    %295 = vmatprep.subr.mxu0 0.0
    %296 = vmatpush1.msra.mxu0 %v248
    %297 = vmatprep.subr.mxu0 0.0
    %298 = vmatpush1.msra.mxu0 %v247
    %299 = vmatprep.subr.mxu0 0.0
    %300 = vmatpush1.msra.mxu0 %v246
    %301 = vmatprep.subr.mxu0 0.0
    %302 = vmatpush1.msra.mxu0 %v245
    %303 = vmatprep.subr.mxu0 0.0
    %304 = vmatpush1.msra.mxu0 %v244
    %305 = vmatprep.subr.mxu0 0.0
    %306 = vmatpush1.msra.mxu0 %v243
    %307 = vmatprep.subr.mxu0 0.0
    %308 = vmatpush2.msra.mxu0 %v274
    %309 = vmatprep.subr.mxu0 0.0
    %310 = vmatpush2.msra.mxu0 %v273
    %311 = vmatprep.subr.mxu0 0.0
    %312 = vmatpush2.msra.mxu0 %v272
    %313 = vmatprep.subr.mxu0 0.0
    %314 = vmatpush2.msra.mxu0 %v271
    %315 = vmatprep.subr.mxu0 0.0
    %316 = vmatpush2.msra.mxu0 %v270
    %317 = vmatprep.subr.mxu0 0.0
    %318 = vmatpush2.msra.mxu0 %v269
    %319 = vmatprep.subr.mxu0 0.0
    %320 = vmatpush2.msra.mxu0 %v268
    %321 = vmatprep.subr.mxu0 0.0
    %322 = vmatpush2.msra.mxu0 %v267
    %323 = vmatprep.subr.mxu0 0.0
    %324 = vmatpush2.msra.mxu0 %v266
    %325 = vmatprep.subr.mxu0 0.0
    %326 = vmatpush2.msra.mxu0 %v265
    %327 = vmatprep.subr.mxu0 0.0
    %328 = vmatpush2.msra.mxu0 %v264
    %329 = vmatprep.subr.mxu0 0.0
    %330 = vmatpush2.msra.mxu0 %v263
    %331 = vmatprep.subr.mxu0 0.0
    %332 = vmatpush2.msra.mxu0 %v262
    %333 = vmatprep.subr.mxu0 0.0
    %334 = vmatpush2.msra.mxu0 %v261
    %335 = vmatprep.subr.mxu0 0.0
    %336 = vmatpush2.msra.mxu0 %v260
    %337 = vmatprep.subr.mxu0 0.0
    %338 = vmatpush2.msra.mxu0 %v259
    %339 = vmatprep.mubr.f32.mxu0 %v242
    %340 = vmatmul.mubr.f32.gmra.mxu0 %v241
    %v341 = vpop.f32.mrf.mxu0
    %v342 = vadd.f32 0.0, %v341
    %v343 = vpop.f32.mrf.mxu0
    %344 = vdwg.mxu0
    %vm345 = vcmask 261120
    %346 = vst.msk [vmem:[#allocation3] sm:$0xff] %vm345, %v342
    // Predicated region
    $region26: #{tpu_custom_call.1} parent=1 // pred_check
      _
    $region27: #{tpu_custom_call.1} parent=1 // pred_check_branch
      %348 = sbr.rel (0) target = $region29
    $region28: #{tpu_custom_call.1} parent=1 // pred_region
      %s350 = ssub.s32 128, 128
      %351 = vsyncadd [#allocation4], %s350
      %s353 = sshll.u32 [#allocation3], 4
      %s354 = int_to_ptr.vmem [resolvable:$true] %s353
      %356 = dma.vmem_to_hbm [thread:$0]  %s354, 128, %s6, [#allocation4]
    $region29: #{tpu_custom_call.1} parent=1 // pred_fallthru
      _
    // Predicated region
    $region30: #{tpu_custom_call.1} parent=1 // pred_check
      _
    $region31: #{tpu_custom_call.1} parent=1 // pred_check_branch
      %358 = sbr.rel (0) target = $region33
    $region32: #{tpu_custom_call.1} parent=1 // pred_region
      %359 = dma.done [#allocation4], 128
    $region33: #{tpu_custom_call.1} parent=1 // pred_fallthru
      _
    %360 = vsyncpa [#allocation4], 1

</llo_original>
